<compile_context>
chip_gen: v7x
topology: tpu7x:2x2x1
jax: 0.10.0
libtpu: 0.0.40
codegen_flags: <defaults>
</compile_context>

<pallas_src>
import jax
import jax.numpy as jnp
from jax import lax
from jax.experimental import pallas as pl
from jax.experimental.pallas import tpu as pltpu

_SUBLANE = 8
# Keep the double-buffered pred tile under ~28 MiB so the same tiling is safe
# on v7x (64 MiB physical / 32 MiB default scoped VMEM) as well as v5e/v6e.
_PRED_VMEM_BUDGET_BYTES = 28 * 1024 * 1024


def _round_up(x, m):
    return ((x + m - 1) // m) * m


def _pg_loss_kernel(pred_ref, target_ref, reward_ref, out_ref):
    # pred_ref:   (TN, V)  f32/bf16  VMEM
    # target_ref: (TN, 1)  int32     VMEM
    # reward_ref: (TN, 1)  float32   VMEM
    # out_ref:    (1, 1)   float32   SMEM  (this tile's own partial sum)
    pred = pred_ref[...]
    tgt = target_ref[...]
    rew = reward_ref[...]

    # Lane iota compared against the per-row target index selects
    # pred[r, target[r]] via a lane reduction.  The reduction is exact even in
    # bf16 because each row has a single nonzero element; accumulate the
    # row * reward product in float32 to match the reference numerics.
    col = lax.broadcasted_iota(jnp.int32, pred.shape, 1)
    masked = jnp.where(col == tgt, pred, jnp.zeros_like(pred))
    selected = jnp.sum(masked, axis=1, keepdims=True).astype(jnp.float32)

    # Per-tile partial of the (already negated) loss; summed in the wrapper.
    out_ref[0, 0] = -jnp.sum(selected * rew)


def pg_loss(pred, target, reward, *, row_tile=None):
    """loss = -sum_i pred[i, target[i]] * reward[i]  (scalar float32).

    pred: (N, V) float32 or bfloat16; target: (N,) int; reward: (N,) float.
    Note: out-of-range target indices contribute 0 (PyTorch scatter would error).
    """
    n, v = pred.shape
    if pred.dtype not in (jnp.float32, jnp.bfloat16):
        pred = pred.astype(jnp.float32)
    itemsize = jnp.dtype(pred.dtype).itemsize

    if row_tile is None:
        # Largest row tile whose double-buffered pred block fits the budget.
        rows = _PRED_VMEM_BUDGET_BYTES // (2 * v * itemsize)
        rows = max(_SUBLANE, (rows // _SUBLANE) * _SUBLANE)
        row_tile = min(rows, _round_up(n, _SUBLANE))
    row_tile = max(_SUBLANE, _round_up(row_tile, _SUBLANE))

    n_pad = _round_up(n, row_tile)
    num_tiles = n_pad // row_tile

    target2d = target.reshape(n, 1).astype(jnp.int32)
    reward2d = reward.reshape(n, 1).astype(jnp.float32)
    if n_pad != n:
        # Padded rows carry reward == 0, so they contribute nothing.
        pred = jnp.pad(pred, ((0, n_pad - n), (0, 0)))
        target2d = jnp.pad(target2d, ((0, n_pad - n), (0, 0)))
        reward2d = jnp.pad(reward2d, ((0, n_pad - n), (0, 0)))

    # Scoped-VMEM limit: double-buffered pred tile + small inputs + margin.
    vmem_limit = 2 * row_tile * v * itemsize + 4 * row_tile * 8 + (4 << 20)
    vmem_limit = int(max(vmem_limit, 32 << 20))

    cost = pl.CostEstimate(
        flops=2 * n_pad * v,
        transcendentals=0,
        bytes_accessed=n_pad * v * itemsize + n_pad * 8 + num_tiles * 4,
    )

    partials = pl.pallas_call(
        _pg_loss_kernel,
        out_shape=jax.ShapeDtypeStruct((num_tiles, 1), jnp.float32),
        grid_spec=pltpu.PrefetchScalarGridSpec(
            num_scalar_prefetch=0,
            grid=(num_tiles,),
            in_specs=[
                pl.BlockSpec((row_tile, v), lambda i: (i, 0)),
                pl.BlockSpec((row_tile, 1), lambda i: (i, 0)),
                pl.BlockSpec((row_tile, 1), lambda i: (i, 0)),
            ],
            out_specs=pl.BlockSpec(
                (1, 1), lambda i: (i, 0), memory_space=pltpu.SMEM
            ),
        ),
        compiler_params=pltpu.CompilerParams(
            # Each tile writes its own partial -> the row-tile axis is
            # independent and may shard across TensorCores (v7x megacore).
            dimension_semantics=("parallel",),
            vmem_limit_bytes=vmem_limit,
        ),
        cost_estimate=cost,
    )(pred, target2d, reward2d)

    # Tiny final reduction over per-tile partials (already negated in-kernel).
    return jnp.sum(partials)


def pg_loss_ref(pred, target, reward):
    # Pure-JAX reference: -sum_i pred[i, target[i]] * reward[i]
    picked = jnp.take_along_axis(
        pred.astype(jnp.float32), target.reshape(-1, 1).astype(jnp.int32), axis=1
    )[:, 0]
    return -jnp.sum(picked * reward.astype(jnp.float32))


if __name__ == "__main__":
    key = jax.random.PRNGKey(0)
    k_pred, k_tgt, k_rew, k2 = jax.random.split(key, 4)

    # Shapes implied by the module: pred rows = batch*seq tokens, vocab columns.
    batch, seq, vocab = 2, 8, 32
    n = batch * seq
    pred = jax.nn.log_softmax(
        jax.random.normal(k_pred, (n, vocab), dtype=jnp.float32), axis=-1
    )
    target = jax.random.randint(k_tgt, (n,), 0, vocab, dtype=jnp.int32)
    reward = jax.random.uniform(k_rew, (n,), dtype=jnp.float32)

    loss = jax.block_until_ready(pg_loss(pred, target, reward))
    ref = pg_loss_ref(pred, target, reward)
    assert jnp.allclose(loss, ref, rtol=1e-5, atol=1e-5), (loss, ref)

    # Ragged row count: exercises host-side padding + a multi-tile parallel grid.
    k2p, k2t, k2r = jax.random.split(k2, 3)
    n2, v2 = 13, 100
    pred2 = jax.random.normal(k2p, (n2, v2), dtype=jnp.float32)
    target2 = jax.random.randint(k2t, (n2,), 0, v2, dtype=jnp.int32)
    reward2 = jax.random.uniform(k2r, (n2,), dtype=jnp.float32)
    loss2 = jax.block_until_ready(pg_loss(pred2, target2, reward2, row_tile=8))
    ref2 = pg_loss_ref(pred2, target2, reward2)
    assert jnp.allclose(loss2, ref2, rtol=1e-5, atol=1e-5), (loss2, ref2)

    print("KERNEL_OK")
</pallas_src>

<mosaic_0001>
module attributes {stable_mosaic.version = 11 : i64} {
  func.func @_pg_loss_kernel(%arg0: i32, %arg1: memref<16x32xf32, #tpu.memory_space<vmem>>, %arg2: memref<16x1xi32, #tpu.memory_space<vmem>>, %arg3: memref<16x1xf32, #tpu.memory_space<vmem>>, %arg4: memref<1x1xf32, #tpu.memory_space<smem>>) attributes {dimension_semantics = [#tpu.dimension_semantics<parallel>], iteration_bounds = array<i64: 1>, scalar_prefetch = 0 : i64, scratch_operands = 0 : i64, tpu.core_type = #tpu.core_type<tc>, window_params = [{transform_indices = @transform_0, window_bounds = array<i64: 16, 32>}, {transform_indices = @transform_1, window_bounds = array<i64: 16, 1>}, {transform_indices = @transform_2, window_bounds = array<i64: 16, 1>}, {transform_indices = @transform_3, window_bounds = array<i64: 1, 1>}]} {
    %c0 = arith.constant 0 : index
    %c0_0 = arith.constant 0 : index
    %0 = vector.load %arg1[%c0, %c0_0] : memref<16x32xf32, #tpu.memory_space<vmem>>, vector<16x32xf32>
    %c0_1 = arith.constant 0 : index
    %c0_2 = arith.constant 0 : index
    %1 = vector.load %arg2[%c0_1, %c0_2] : memref<16x1xi32, #tpu.memory_space<vmem>>, vector<16x1xi32>
    %c0_3 = arith.constant 0 : index
    %c0_4 = arith.constant 0 : index
    %2 = vector.load %arg3[%c0_3, %c0_4] : memref<16x1xf32, #tpu.memory_space<vmem>>, vector<16x1xf32>
    %3 = tpu.iota {dimensions = array<i32: 1>} : vector<16x32xi32>
    %4 = vector.broadcast %1 : vector<16x1xi32> to vector<16x32xi32>
    %5 = arith.cmpi eq, %3, %4 : vector<16x32xi32>
    %cst = arith.constant 0.000000e+00 : f32
    %6 = vector.broadcast %cst : f32 to vector<16x32xf32>
    %7 = arith.select %5, %0, %6 : vector<16x32xi1>, vector<16x32xf32>
    %cst_5 = arith.constant dense<0.000000e+00> : vector<16xf32>
    %8 = vector.multi_reduction <add>, %7, %cst_5 [1] : vector<16x32xf32> to vector<16xf32>
    %9 = vector.shape_cast %8 : vector<16xf32> to vector<16x1xf32>
    %10 = arith.mulf %9, %2 : vector<16x1xf32>
    %11 = vector.shape_cast %10 : vector<16x1xf32> to vector<1x16x1xf32>
    %cst_6 = arith.constant dense<0.000000e+00> : vector<1xf32>
    %12 = vector.multi_reduction <add>, %11, %cst_6 [1, 2] : vector<1x16x1xf32> to vector<1xf32>
    %13 = vector.shape_cast %12 : vector<1xf32> to vector<1x1x1xf32>
    %14 = vector.extract %13[0, 0, 0] : f32 from vector<1x1x1xf32>
    %cst_7 = arith.constant 0.000000e+00 : f32
    %15 = arith.subf %cst_7, %14 : f32
    %c0_8 = arith.constant 0 : index
    %c0_9 = arith.constant 0 : index
    %16 = memref.load %arg4[%c0_8, %c0_9] : memref<1x1xf32, #tpu.memory_space<smem>>
    memref.store %15, %arg4[%c0_8, %c0_9] : memref<1x1xf32, #tpu.memory_space<smem>>
    return
  }
  func.func @transform_0(%arg0: i32) -> (i32, i32) {
    %c0_i32 = arith.constant 0 : i32
    %c0_i32_0 = arith.constant 0 : i32
    return %arg0, %c0_i32 : i32, i32
  }
  func.func @transform_1(%arg0: i32) -> (i32, i32) {
    %c0_i32 = arith.constant 0 : i32
    %c0_i32_0 = arith.constant 0 : i32
    return %arg0, %c0_i32 : i32, i32
  }
  func.func @transform_2(%arg0: i32) -> (i32, i32) {
    %c0_i32 = arith.constant 0 : i32
    %c0_i32_0 = arith.constant 0 : i32
    return %arg0, %c0_i32 : i32, i32
  }
  func.func @transform_3(%arg0: i32) -> (i32, i32) {
    %c0_i32 = arith.constant 0 : i32
    %c0_i32_0 = arith.constant 0 : i32
    return %arg0, %c0_i32 : i32, i32
  }
}

</mosaic_0001>

<llo_original>
// kernel: tpu_custom_call.1
$region0: #{tpu_custom_call.1}
  #allocation0 [shape = 'u32[]', space=smem, size = 0x4, offset = 0x4, fixed_abs, tag = 'smem constant byte address 0x4 - core index']
  #allocation1 [shape = 'u32[144,128]{1,0:T(1,128)}', space=vmem, size = 0x12000, scoped, tag = 'internal scratch']
  %s0 = inlined_call_operand.vmem [shape: f32[16,32], index: 0, kind: input, shape index: {}]
  %s1 = inlined_call_operand.vmem [shape: s32[16,1], index: 1, kind: input, shape index: {}]
  %s2 = inlined_call_operand.vmem [shape: f32[16,1], index: 2, kind: input, shape index: {}]
  %s3 = inlined_call_operand.hbm [shape: f32[1,1], index: 3, kind: output, shape index: {}]
  %s4 = sld [smem:[#allocation0]]
  $region22: #{tpu_custom_call.1} parent=0
    _
  %s6 = ssub.s32 1, %s4
  %s7 = scalar_select 0, %s6, %s4
  $region1: #{tpu_custom_call.1} parent=0
    #allocation2 [shape = 'u8[512]{0}', space=smem, size = 0x200, scoped, tag = 'output window, operand 0, single buffered']
    #allocation3 [shape = 's32[1]{0}', space=sflag, size = 0x4, scoped, tag = 'scoped memory for tpu_custom_call.1']
    %8 = vsyncpa [#allocation3], 0
    // Predicated region
    $region2: #{tpu_custom_call.1} parent=1 // pred_check
      _
    $region3: #{tpu_custom_call.1} parent=1 // pred_check_branch
      %10 = sbr.rel (0) target = $region5
    $region4: #{tpu_custom_call.1} parent=1 // pred_region
      _
    $region5: #{tpu_custom_call.1} parent=1 // pred_fallthru
      _
    // Predicated region
    $region6: #{tpu_custom_call.1} parent=1 // pred_check
      _
    $region7: #{tpu_custom_call.1} parent=1 // pred_check_branch
      %12 = sbr.rel (0) target = $region9
    $region8: #{tpu_custom_call.1} parent=1 // pred_region
      _
    $region9: #{tpu_custom_call.1} parent=1 // pred_fallthru
      _
    // Predicated region
    $region10: #{tpu_custom_call.1} parent=1 // pred_check
      _
    $region11: #{tpu_custom_call.1} parent=1 // pred_check_branch
      %14 = sbr.rel (0) target = $region13
    $region12: #{tpu_custom_call.1} parent=1 // pred_region
      _
    $region13: #{tpu_custom_call.1} parent=1 // pred_fallthru
      _
    %v15 = vld [vmem:[%s0] sm:$0xff]
    %v16 = vld [vmem:[%s0 + $0x8] sm:$0xff]
    %v17 = vld [vmem:[%s1] sm:$0xff]
    %v18 = vld [vmem:[%s1 + $0x8] sm:$0xff]
    %v19 = vld [vmem:[%s2] sm:$0xff]
    %v20 = vld [vmem:[%s2 + $0x8] sm:$0xff]
    %v21 = vlaneseq
    %v22 = vand.u32 %v21, 127
    %23 = vset.pattern.permute.xlu0 0
    %24 = vperm.xlu0 %23, %v17
    %v25 = vpop.permute.xlu0 %24
    %26 = vset.pattern.permute.xlu0 0
    %27 = vperm.xlu0 %26, %v18
    %v28 = vpop.permute.xlu0 %27
    %vm29 = vcmp.eq.s32.totalorder %v22, %v25
    %vm30 = vcmp.eq.s32.totalorder %v22, %v28
    %v31 = vsel %vm29, %v15, 0.0
    %v32 = vsel %vm30, %v16, 0.0
    %vm33 = vcmask 261120
    %v34 = vsel %vm33, %v31, 0.0
    %35 = vadd.xlane.f32.xlu0 %v34
    %v36 = vpop.xlane.xlu0 %35
    %v37 = vsel %vm33, %v32, 0.0
    %38 = vadd.xlane.f32.xlu0 %v37
    %v39 = vpop.xlane.xlu0 %38
    %v40 = vmul.f32 %v36, %v19
    %v41 = vmul.f32 %v39, %v20
    %vm42 = vcmask 7168
    %v43 = vsel %vm42, %v40, 0.0
    %v44 = vsel %vm42, %v41, 0.0
    %v45 = vadd.f32 %v43, %v44
    %46 = vadd.xlane.f32.xlu0 %v45
    %v47 = vpop.xlane.xlu0 %46
    %v48 = vrot.slane %v47, 4
    %v49 = vadd.f32 %v47, %v48
    %v50 = vrot.slane %v49, 2
    %v51 = vadd.f32 %v49, %v50
    %v52 = vrot.slane %v51, 1
    %v53 = vadd.f32 %v51, %v52
    %s54 = vtos %v53
    %s55 = ssub.f32 0.0, %s54
    %s56 = scalar_lea.smem [#allocation2], 0
    %57 = sst [smem:[%s56]] %s55
    // Predicated region
    $region14: #{tpu_custom_call.1} parent=1 // pred_check
      _
    $region15: #{tpu_custom_call.1} parent=1 // pred_check_branch
      %59 = sbr.rel (0) target = $region17
    $region16: #{tpu_custom_call.1} parent=1 // pred_region
      %s61 = ssub.s32 16, 16
      %62 = vsyncadd [#allocation3], %s61
      %65 = dma.smem_to_hbm [#allocation2], 16, %s3, [#allocation3]
    $region17: #{tpu_custom_call.1} parent=1 // pred_fallthru
      _
    // Predicated region
    $region18: #{tpu_custom_call.1} parent=1 // pred_check
      _
    $region19: #{tpu_custom_call.1} parent=1 // pred_check_branch
      %67 = sbr.rel (0) target = $region21
    $region20: #{tpu_custom_call.1} parent=1 // pred_region
      %68 = dma.done [#allocation3], 16
    $region21: #{tpu_custom_call.1} parent=1 // pred_fallthru
      _
    %69 = sfence
    %70 = vsyncpa [#allocation3], 1

</llo_original>
